<compile_context>
chip_gen: v5e
topology: v5e:2x2
jax: 0.10.0
libtpu: 0.0.40
codegen_flags: <defaults>
</compile_context>

<pallas_src>
import functools

import jax
import jax.numpy as jnp
from jax import lax
from jax.experimental import pallas as pl
from jax.experimental.pallas import tpu as pltpu

EPS = 1e-5


# ----------------------------- hoisted precompute -----------------------------

def _band_weight(w_oihw, W):
    """torch (Cout, Cin, 3, 3) conv weight -> (W*Cin, 3*W*Cout) banded matmul weight.

    Lane-block dh in {0,1,2} maps input lane (w', ci) to output lane (w, co) with
    value K[dh, w'-w+1, ci, co] when 0 <= w'-w+1 <= 2 (zero otherwise), so one matmul
    applies all three dw taps of kernel row dh with implicit zero padding along W.
    """
    Cout, Cin, KH, KW = w_oihw.shape
    k = jnp.transpose(w_oihw, (2, 3, 1, 0))                 # (dh, dw, ci, co)
    wp = jnp.arange(W)[:, None, None]                       # input column w'
    dw = jnp.arange(KW)[None, :, None]
    wo = jnp.arange(W)[None, None, :]                       # output column w
    sel = (wp == wo + dw - 1).astype(w_oihw.dtype)          # (w', dw, w)
    blocks = jnp.einsum("hdio,pdw->hpiwo", k, sel)          # (KH, W, Cin, W, Cout)
    blocks = blocks.reshape(KH, W * Cin, W * Cout)
    return jnp.concatenate([blocks[0], blocks[1], blocks[2]], axis=1)


def _identity_band(w_oi11, W):
    """torch (Cout, Cin, 1, 1) conv weight -> (W*Cin, W*Cout) block-diagonal weight."""
    Cout, Cin = w_oi11.shape[0], w_oi11.shape[1]
    k = w_oi11.reshape(Cout, Cin).T                         # (ci, co)
    eye = jnp.eye(W, dtype=w_oi11.dtype)
    return jnp.einsum("io,pw->piwo", k, eye).reshape(W * Cin, W * Cout)


def _channel_fold(W, C, dtype):
    """(W*C, W*C) 0/1 matrix: sums the W lane copies of each channel, broadcasts back."""
    i = jnp.arange(W * C)
    return ((i[:, None] % C) == (i[None, :] % C)).astype(dtype)


def prepare_block_params(params, *, W, cin_pad):
    """Run ONCE per parameter set (hoisted out of the forward path)."""
    f32, bf16 = jnp.float32, jnp.bfloat16
    w1, w2, wi = params["conv1_w"], params["conv2_w"], params["id_conv_w"]
    Cmid, Cin = w1.shape[0], w1.shape[1]
    Cout = w2.shape[0]
    assert cin_pad >= Cin and cin_pad == Cmid == Cout, "toy-config packing assumption"

    # zero-pad input channels -> 128-lane-dense input slab; padded rows/gamma/beta are 0
    w1p = jnp.zeros((Cmid, cin_pad, 3, 3), f32).at[:, :Cin].set(w1.astype(f32))
    wip = jnp.zeros((Cout, cin_pad, 1, 1), f32).at[:, :Cin].set(wi.astype(f32))
    g1 = jnp.zeros((cin_pad,), f32).at[:Cin].set(params["bn1_gamma"].astype(f32))
    b1 = jnp.zeros((cin_pad,), f32).at[:Cin].set(params["bn1_beta"].astype(f32))

    gb = jnp.stack([jnp.tile(g1, W), jnp.tile(b1, W),
                    jnp.tile(params["bn2_gamma"].astype(f32), W),
                    jnp.tile(params["bn2_beta"].astype(f32), W)])          # (4, W*cin_pad)

    return dict(
        gb=gb,                                                             # f32 (4, 128)
        fold=_channel_fold(W, cin_pad, f32),                               # f32 (128, 128)
        w1_band=_band_weight(w1p, W).astype(bf16),                         # bf16 (128, 384)
        w2_band=_band_weight(w2.astype(f32), W).astype(bf16),              # bf16 (128, 384)
        id_band=_identity_band(wip, W).astype(bf16),                       # bf16 (128, 128)
    )


# --------------------------------- the kernel ---------------------------------

def _kernel(x_ref, gb_ref, fold_ref, w1_ref, w2_ref, id_ref, out_ref,
            *, H, NH, width, inv_nhw):
    bf16 = jnp.bfloat16
    x = x_ref[...]                                           # (NH, width) f32

    # per-row image-boundary masks for the dh = 0 / 2 conv taps (zero padding along H)
    row = lax.broadcasted_iota(jnp.int32, (NH, 1), 0) % H
    mask_up = (row != 0).astype(jnp.float32)
    mask_dn = (row != H - 1).astype(jnp.float32)

    def bn_relu(t, gamma, beta):
        # training-mode BN, single-pass stats; channel fold + broadcast-back fused
        # into ONE (2,K)@(K,K) matmul; everything on this path stays f32.
        s = jnp.sum(t, axis=0, keepdims=True)
        q = jnp.sum(t * t, axis=0, keepdims=True)
        folded = jnp.dot(jnp.concatenate([s, q], axis=0), fold_ref[...],
                         preferred_element_type=jnp.float32) * inv_nhw
        m, e2 = folded[0:1, :], folded[1:2, :]
        var = e2 - m * m
        scale = gamma * lax.rsqrt(var + EPS)
        shift = beta - m * scale
        return jnp.maximum(t * scale + shift, 0.0)

    def conv_rows(p):
        # p holds the dw-fused taps for dh = 0,1,2 lane-concatenated (128-aligned);
        # the dh = 0/2 taps are applied with XLU rolls + boundary masks (no matmuls).
        up = pltpu.roll(p[:, :width], shift=1, axis=0) * mask_up
        dn = pltpu.roll(p[:, 2 * width:], shift=NH - 1, axis=0) * mask_dn
        return up + p[:, width:2 * width] + dn

    h1 = bn_relu(x, gb_ref[0:1, :], gb_ref[1:2, :])                         # (NH, width)
    p1 = jnp.dot(h1.astype(bf16), w1_ref[...],
                 preferred_element_type=jnp.float32)                        # (NH, 3*width)
    c1 = conv_rows(p1)                                                      # conv_1
    h2 = bn_relu(c1, gb_ref[2:3, :], gb_ref[3:4, :])
    p2 = jnp.dot(h2.astype(bf16), w2_ref[...],
                 preferred_element_type=jnp.float32)                        # conv_2 taps
    idn = jnp.dot(x.astype(bf16), id_ref[...],
                  preferred_element_type=jnp.float32)                       # 1x1 identity
    out_ref[...] = conv_rows(p2) + idn                                      # lane-dense


def basic_residual_block(x_nchw, prep):
    """Forward of BasicResidualBlock(in, mid, out, downsample=False); prep from
    prepare_block_params (hoisted, parameter-only precompute)."""
    # TODO(synk): downsample=True variant (AvgPool2d identity + stride-2 conv_1) not implemented.
    N, Cin, H, W = x_nchw.shape
    f32 = jnp.float32
    width = prep["fold"].shape[0]            # = W * cin_pad (128)
    cpad = width // W
    Cout = prep["id_band"].shape[1] // W
    NH = N * H
    inv_nhw = 1.0 / float(N * H * W)

    # glue (free XLA layout plumbing): lane-dense (NH, 128) slab, channels padded to cpad
    x_nhwc = jnp.transpose(x_nchw, (0, 2, 3, 1)).astype(f32)
    if cpad > Cin:
        x_nhwc = jnp.concatenate(
            [x_nhwc, jnp.zeros((N, H, W, cpad - Cin), f32)], axis=-1)
    x_wide = x_nhwc.reshape(NH, W * cpad)

    kernel = functools.partial(_kernel, H=H, NH=NH, width=width, inv_nhw=inv_nhw)
    vmem = pl.BlockSpec(memory_space=pltpu.MemorySpace.VMEM)
    out_wide = pl.pallas_call(
        kernel,
        out_shape=jax.ShapeDtypeStruct((NH, W * Cout), f32),
        in_specs=[vmem] * 6,
        out_specs=vmem,
        # TODO(synk): for v7x megacore / real ResNet shapes, add a "parallel" grid
        # axis over N (or N*H tiles) with halo BlockSpecs + two-phase BN-stats
        # reduction, and retile the banded weights (per-tap Cin->Cout matmuls) so
        # operands fit the 64 MiB VMEM; at this toy size everything fits gridless.
    )(x_wide, prep["gb"], prep["fold"], prep["w1_band"], prep["w2_band"], prep["id_band"])

    return jnp.transpose(out_wide.reshape(N, H, W, Cout), (0, 3, 1, 2))


# --------------------------------- reference -----------------------------------

def init_params(key, cin, cmid, cout):
    ks = jax.random.split(key, 7)
    return dict(
        conv1_w=0.1 * jax.random.normal(ks[0], (cmid, cin, 3, 3), jnp.float32),
        conv2_w=0.1 * jax.random.normal(ks[1], (cout, cmid, 3, 3), jnp.float32),
        id_conv_w=0.1 * jax.random.normal(ks[2], (cout, cin, 1, 1), jnp.float32),
        bn1_gamma=1.0 + 0.1 * jax.random.normal(ks[3], (cin,), jnp.float32),
        bn1_beta=0.1 * jax.random.normal(ks[4], (cin,), jnp.float32),
        bn2_gamma=1.0 + 0.1 * jax.random.normal(ks[5], (cmid,), jnp.float32),
        bn2_beta=0.1 * jax.random.normal(ks[6], (cmid,), jnp.float32),
    )


def reference_forward(x, params):
    """Pure-JAX (XLA) reference mirroring the torch forward (NCHW)."""
    def bn(t, g, b):
        m = jnp.mean(t, axis=(0, 2, 3), keepdims=True)
        v = jnp.mean((t - m) ** 2, axis=(0, 2, 3), keepdims=True)
        return (t - m) * lax.rsqrt(v + EPS) * g.reshape(1, -1, 1, 1) + b.reshape(1, -1, 1, 1)

    dn = ("NCHW", "OIHW", "NCHW")
    h = jnp.maximum(bn(x, params["bn1_gamma"], params["bn1_beta"]), 0.0)
    h = lax.conv_general_dilated(h, params["conv1_w"], (1, 1), ((1, 1), (1, 1)),
                                 dimension_numbers=dn)
    h = jnp.maximum(bn(h, params["bn2_gamma"], params["bn2_beta"]), 0.0)
    h = lax.conv_general_dilated(h, params["conv2_w"], (1, 1), ((1, 1), (1, 1)),
                                 dimension_numbers=dn)
    idn = lax.conv_general_dilated(x, params["id_conv_w"], (1, 1), ((0, 0), (0, 0)),
                                   dimension_numbers=dn)
    return idn + h


if __name__ == "__main__":
    key = jax.random.PRNGKey(0)
    kx, kp = jax.random.split(key)
    N, Cin, H, W = 2, 4, 16, 16
    Cmid, Cout = 8, 8

    x = jax.random.normal(kx, (N, Cin, H, W), jnp.float32)
    params = init_params(kp, Cin, Cmid, Cout)

    # hoisted: built once per parameter set, reused across forwards
    prep = jax.tree_util.tree_map(jax.block_until_ready,
                                  prepare_block_params(params, W=W, cin_pad=8))

    fwd = jax.jit(basic_residual_block)
    out = jax.block_until_ready(fwd(x, prep))
    ref = jax.block_until_ready(reference_forward(x, params))

    assert out.shape == (N, Cout, H, W), out.shape
    assert jnp.allclose(out, ref, atol=5e-2, rtol=5e-2), \
        f"max abs err {float(jnp.max(jnp.abs(out - ref)))}"
    print("KERNEL_OK")
</pallas_src>

<mosaic_0001>
module attributes {stable_mosaic.version = 11 : i64} {
  func.func @_kernel(%arg0: memref<32x128xf32, #tpu.memory_space<vmem>>, %arg1: memref<4x128xf32, #tpu.memory_space<vmem>>, %arg2: memref<128x128xf32, #tpu.memory_space<vmem>>, %arg3: memref<128x384xbf16, #tpu.memory_space<vmem>>, %arg4: memref<128x384xbf16, #tpu.memory_space<vmem>>, %arg5: memref<128x128xbf16, #tpu.memory_space<vmem>>, %arg6: memref<32x128xf32, #tpu.memory_space<vmem>>) attributes {dimension_semantics = [], scalar_prefetch = 0 : i64, scratch_operands = 0 : i64, tpu.core_type = #tpu.core_type<tc>} {
    %c0 = arith.constant 0 : index
    %c0_0 = arith.constant 0 : index
    %0 = vector.load %arg0[%c0, %c0_0] : memref<32x128xf32, #tpu.memory_space<vmem>>, vector<32x128xf32>
    %1 = tpu.iota {dimensions = array<i32: 0>} : vector<32x1xi32>
    %c16_i32 = arith.constant 16 : i32
    %c0_i32 = arith.constant 0 : i32
    %2 = arith.cmpi eq, %c16_i32, %c0_i32 : i32
    %c1_i32 = arith.constant 1 : i32
    %3 = arith.select %2, %c1_i32, %c16_i32 : i32
    %4 = vector.broadcast %3 : i32 to vector<32x1xi32>
    %5 = arith.remsi %1, %4 : vector<32x1xi32>
    %c0_i32_1 = arith.constant 0 : i32
    %6 = vector.broadcast %c0_i32_1 : i32 to vector<32x1xi32>
    %7 = arith.cmpi ne, %5, %6 : vector<32x1xi32>
    %c0_i32_2 = arith.constant 0 : i32
    %8 = vector.broadcast %c0_i32_2 : i32 to vector<32x1xi32>
    %9 = arith.cmpi slt, %5, %8 : vector<32x1xi32>
    %c0_i32_3 = arith.constant 0 : i32
    %10 = arith.cmpi slt, %3, %c0_i32_3 : i32
    %11 = vector.broadcast %10 : i1 to vector<32x1xi1>
    %12 = vector.broadcast %11 : vector<32x1xi1> to vector<32x1xi1>
    %13 = arith.xori %9, %12 : vector<32x1xi1>
    %14 = arith.andi %13, %7 : vector<32x1xi1>
    %15 = vector.broadcast %3 : i32 to vector<32x1xi32>
    %16 = arith.addi %5, %15 : vector<32x1xi32>
    %17 = arith.select %14, %16, %5 : vector<32x1xi1>, vector<32x1xi32>
    %c0_i32_4 = arith.constant 0 : i32
    %18 = vector.broadcast %c0_i32_4 : i32 to vector<32x1xi32>
    %19 = arith.cmpi ne, %17, %18 : vector<32x1xi32>
    %20 = arith.extui %19 : vector<32x1xi1> to vector<32x1xi32>
    %21 = arith.sitofp %20 : vector<32x1xi32> to vector<32x1xf32>
    %c15_i32 = arith.constant 15 : i32
    %22 = vector.broadcast %c15_i32 : i32 to vector<32x1xi32>
    %23 = arith.cmpi ne, %17, %22 : vector<32x1xi32>
    %24 = arith.extui %23 : vector<32x1xi1> to vector<32x1xi32>
    %25 = arith.sitofp %24 : vector<32x1xi32> to vector<32x1xf32>
    %c0_5 = arith.constant 0 : index
    %c0_6 = arith.constant 0 : index
    %26 = vector.load %arg1[%c0_5, %c0_6] : memref<4x128xf32, #tpu.memory_space<vmem>>, vector<1x128xf32>
    %c1 = arith.constant 1 : index
    %c0_7 = arith.constant 0 : index
    %27 = vector.load %arg1[%c1, %c0_7] : memref<4x128xf32, #tpu.memory_space<vmem>>, vector<1x128xf32>
    %cst = arith.constant dense<0.000000e+00> : vector<128xf32>
    %28 = vector.multi_reduction <add>, %0, %cst [0] : vector<32x128xf32> to vector<128xf32>
    %29 = vector.shape_cast %28 : vector<128xf32> to vector<1x128xf32>
    %30 = arith.mulf %0, %0 : vector<32x128xf32>
    %cst_8 = arith.constant dense<0.000000e+00> : vector<128xf32>
    %31 = vector.multi_reduction <add>, %30, %cst_8 [0] : vector<32x128xf32> to vector<128xf32>
    %32 = vector.shape_cast %31 : vector<128xf32> to vector<1x128xf32>
    %33 = tpu.concatenate %29, %32 in 0 : vector<1x128xf32>, vector<1x128xf32> -> vector<2x128xf32>
    %c0_9 = arith.constant 0 : index
    %c0_10 = arith.constant 0 : index
    %34 = vector.load %arg2[%c0_9, %c0_10] : memref<128x128xf32, #tpu.memory_space<vmem>>, vector<128x128xf32>
    %cst_11 = arith.constant dense<0.000000e+00> : vector<2x128xf32>
    %35 = tpu.matmul %33, %34, %cst_11 {dimension_numbers = #tpu.dot_dimension_numbers<[1], [0], [0], [1], [0, 0, 1, 1], [], []>} : vector<2x128xf32>, vector<128x128xf32>, vector<2x128xf32> -> vector<2x128xf32>
    %cst_12 = arith.constant 0.001953125 : f32
    %36 = vector.broadcast %cst_12 : f32 to vector<2x128xf32>
    %37 = arith.mulf %35, %36 : vector<2x128xf32>
    %38 = vector.extract_strided_slice %37 {offsets = [0, 0], sizes = [1, 128], strides = [1, 1]} : vector<2x128xf32> to vector<1x128xf32>
    %39 = vector.extract_strided_slice %37 {offsets = [1, 0], sizes = [1, 128], strides = [1, 1]} : vector<2x128xf32> to vector<1x128xf32>
    %40 = arith.mulf %38, %38 : vector<1x128xf32>
    %41 = arith.subf %39, %40 : vector<1x128xf32>
    %cst_13 = arith.constant 9.99999974E-6 : f32
    %42 = vector.broadcast %cst_13 : f32 to vector<1x128xf32>
    %43 = arith.addf %41, %42 : vector<1x128xf32>
    %44 = math.rsqrt %43 : vector<1x128xf32>
    %45 = arith.mulf %26, %44 : vector<1x128xf32>
    %46 = arith.mulf %38, %45 : vector<1x128xf32>
    %47 = arith.subf %27, %46 : vector<1x128xf32>
    %48 = vector.broadcast %45 : vector<1x128xf32> to vector<32x128xf32>
    %49 = arith.mulf %0, %48 : vector<32x128xf32>
    %50 = vector.broadcast %47 : vector<1x128xf32> to vector<32x128xf32>
    %51 = arith.addf %49, %50 : vector<32x128xf32>
    %cst_14 = arith.constant 0.000000e+00 : f32
    %52 = vector.broadcast %cst_14 : f32 to vector<32x128xf32>
    %53 = arith.maximumf %51, %52 : vector<32x128xf32>
    %54 = arith.truncf %53 : vector<32x128xf32> to vector<32x128xbf16>
    %c0_15 = arith.constant 0 : index
    %c0_16 = arith.constant 0 : index
    %55 = vector.load %arg3[%c0_15, %c0_16] : memref<128x384xbf16, #tpu.memory_space<vmem>>, vector<128x384xbf16>
    %cst_17 = arith.constant dense<0.000000e+00> : vector<32x384xf32>
    %56 = tpu.matmul %54, %55, %cst_17 {dimension_numbers = #tpu.dot_dimension_numbers<[1], [0], [0], [1], [0, 0, 1, 1], [], []>} : vector<32x128xbf16>, vector<128x384xbf16>, vector<32x384xf32> -> vector<32x384xf32>
    %57 = vector.extract_strided_slice %56 {offsets = [0, 0], sizes = [32, 128], strides = [1, 1]} : vector<32x384xf32> to vector<32x128xf32>
    %c1_i32_18 = arith.constant 1 : i32
    %58 = tpu.dynamic_rotate %57 by %c1_i32_18 dim 0 : vector<32x128xf32>, i32 -> vector<32x128xf32>
    %59 = vector.broadcast %21 : vector<32x1xf32> to vector<32x128xf32>
    %60 = arith.mulf %58, %59 : vector<32x128xf32>
    %61 = vector.extract_strided_slice %56 {offsets = [0, 256], sizes = [32, 128], strides = [1, 1]} : vector<32x384xf32> to vector<32x128xf32>
    %c31_i32 = arith.constant 31 : i32
    %62 = tpu.dynamic_rotate %61 by %c31_i32 dim 0 : vector<32x128xf32>, i32 -> vector<32x128xf32>
    %63 = vector.broadcast %25 : vector<32x1xf32> to vector<32x128xf32>
    %64 = arith.mulf %62, %63 : vector<32x128xf32>
    %65 = vector.extract_strided_slice %56 {offsets = [0, 128], sizes = [32, 128], strides = [1, 1]} : vector<32x384xf32> to vector<32x128xf32>
    %66 = arith.addf %60, %65 : vector<32x128xf32>
    %67 = arith.addf %66, %64 : vector<32x128xf32>
    %c2 = arith.constant 2 : index
    %c0_19 = arith.constant 0 : index
    %68 = vector.load %arg1[%c2, %c0_19] : memref<4x128xf32, #tpu.memory_space<vmem>>, vector<1x128xf32>
    %c3 = arith.constant 3 : index
    %c0_20 = arith.constant 0 : index
    %69 = vector.load %arg1[%c3, %c0_20] : memref<4x128xf32, #tpu.memory_space<vmem>>, vector<1x128xf32>
    %cst_21 = arith.constant dense<0.000000e+00> : vector<128xf32>
    %70 = vector.multi_reduction <add>, %67, %cst_21 [0] : vector<32x128xf32> to vector<128xf32>
    %71 = vector.shape_cast %70 : vector<128xf32> to vector<1x128xf32>
    %72 = arith.mulf %67, %67 : vector<32x128xf32>
    %cst_22 = arith.constant dense<0.000000e+00> : vector<128xf32>
    %73 = vector.multi_reduction <add>, %72, %cst_22 [0] : vector<32x128xf32> to vector<128xf32>
    %74 = vector.shape_cast %73 : vector<128xf32> to vector<1x128xf32>
    %75 = tpu.concatenate %71, %74 in 0 : vector<1x128xf32>, vector<1x128xf32> -> vector<2x128xf32>
    %c0_23 = arith.constant 0 : index
    %c0_24 = arith.constant 0 : index
    %76 = vector.load %arg2[%c0_23, %c0_24] : memref<128x128xf32, #tpu.memory_space<vmem>>, vector<128x128xf32>
    %cst_25 = arith.constant dense<0.000000e+00> : vector<2x128xf32>
    %77 = tpu.matmul %75, %76, %cst_25 {dimension_numbers = #tpu.dot_dimension_numbers<[1], [0], [0], [1], [0, 0, 1, 1], [], []>} : vector<2x128xf32>, vector<128x128xf32>, vector<2x128xf32> -> vector<2x128xf32>
    %cst_26 = arith.constant 0.001953125 : f32
    %78 = vector.broadcast %cst_26 : f32 to vector<2x128xf32>
    %79 = arith.mulf %77, %78 : vector<2x128xf32>
    %80 = vector.extract_strided_slice %79 {offsets = [0, 0], sizes = [1, 128], strides = [1, 1]} : vector<2x128xf32> to vector<1x128xf32>
    %81 = vector.extract_strided_slice %79 {offsets = [1, 0], sizes = [1, 128], strides = [1, 1]} : vector<2x128xf32> to vector<1x128xf32>
    %82 = arith.mulf %80, %80 : vector<1x128xf32>
    %83 = arith.subf %81, %82 : vector<1x128xf32>
    %cst_27 = arith.constant 9.99999974E-6 : f32
    %84 = vector.broadcast %cst_27 : f32 to vector<1x128xf32>
    %85 = arith.addf %83, %84 : vector<1x128xf32>
    %86 = math.rsqrt %85 : vector<1x128xf32>
    %87 = arith.mulf %68, %86 : vector<1x128xf32>
    %88 = arith.mulf %80, %87 : vector<1x128xf32>
    %89 = arith.subf %69, %88 : vector<1x128xf32>
    %90 = vector.broadcast %87 : vector<1x128xf32> to vector<32x128xf32>
    %91 = arith.mulf %67, %90 : vector<32x128xf32>
    %92 = vector.broadcast %89 : vector<1x128xf32> to vector<32x128xf32>
    %93 = arith.addf %91, %92 : vector<32x128xf32>
    %cst_28 = arith.constant 0.000000e+00 : f32
    %94 = vector.broadcast %cst_28 : f32 to vector<32x128xf32>
    %95 = arith.maximumf %93, %94 : vector<32x128xf32>
    %96 = arith.truncf %95 : vector<32x128xf32> to vector<32x128xbf16>
    %c0_29 = arith.constant 0 : index
    %c0_30 = arith.constant 0 : index
    %97 = vector.load %arg4[%c0_29, %c0_30] : memref<128x384xbf16, #tpu.memory_space<vmem>>, vector<128x384xbf16>
    %cst_31 = arith.constant dense<0.000000e+00> : vector<32x384xf32>
    %98 = tpu.matmul %96, %97, %cst_31 {dimension_numbers = #tpu.dot_dimension_numbers<[1], [0], [0], [1], [0, 0, 1, 1], [], []>} : vector<32x128xbf16>, vector<128x384xbf16>, vector<32x384xf32> -> vector<32x384xf32>
    %99 = arith.truncf %0 : vector<32x128xf32> to vector<32x128xbf16>
    %c0_32 = arith.constant 0 : index
    %c0_33 = arith.constant 0 : index
    %100 = vector.load %arg5[%c0_32, %c0_33] : memref<128x128xbf16, #tpu.memory_space<vmem>>, vector<128x128xbf16>
    %cst_34 = arith.constant dense<0.000000e+00> : vector<32x128xf32>
    %101 = tpu.matmul %99, %100, %cst_34 {dimension_numbers = #tpu.dot_dimension_numbers<[1], [0], [0], [1], [0, 0, 1, 1], [], []>} : vector<32x128xbf16>, vector<128x128xbf16>, vector<32x128xf32> -> vector<32x128xf32>
    %102 = vector.extract_strided_slice %98 {offsets = [0, 0], sizes = [32, 128], strides = [1, 1]} : vector<32x384xf32> to vector<32x128xf32>
    %c1_i32_35 = arith.constant 1 : i32
    %103 = tpu.dynamic_rotate %102 by %c1_i32_35 dim 0 : vector<32x128xf32>, i32 -> vector<32x128xf32>
    %104 = vector.broadcast %21 : vector<32x1xf32> to vector<32x128xf32>
    %105 = arith.mulf %103, %104 : vector<32x128xf32>
    %106 = vector.extract_strided_slice %98 {offsets = [0, 256], sizes = [32, 128], strides = [1, 1]} : vector<32x384xf32> to vector<32x128xf32>
    %c31_i32_36 = arith.constant 31 : i32
    %107 = tpu.dynamic_rotate %106 by %c31_i32_36 dim 0 : vector<32x128xf32>, i32 -> vector<32x128xf32>
    %108 = vector.broadcast %25 : vector<32x1xf32> to vector<32x128xf32>
    %109 = arith.mulf %107, %108 : vector<32x128xf32>
    %110 = vector.extract_strided_slice %98 {offsets = [0, 128], sizes = [32, 128], strides = [1, 1]} : vector<32x384xf32> to vector<32x128xf32>
    %111 = arith.addf %105, %110 : vector<32x128xf32>
    %112 = arith.addf %111, %109 : vector<32x128xf32>
    %113 = arith.addf %112, %101 : vector<32x128xf32>
    %c0_37 = arith.constant 0 : index
    %c0_38 = arith.constant 0 : index
    %114 = vector.load %arg6[%c0_37, %c0_38] : memref<32x128xf32, #tpu.memory_space<vmem>>, vector<32x128xf32>
    tpu.vector_store %arg6[%c0_37, %c0_38], %113 {strides = array<i32>} : memref<32x128xf32, #tpu.memory_space<vmem>>, vector<32x128xf32>,
    return
  }
}

</mosaic_0001>

<llo_original>
// kernel: basic_residual_block.1
$region0: #{basic_residual_block.1}
  #allocation0 [shape = 'u32[]', space=smem, size = 0x4, offset = 0x4, fixed_abs, tag = 'smem constant byte address 0x4 - core index']
  #allocation1 [shape = 'u32[72,128]{1,0:T(1,128)}', space=vmem, size = 0x9000, scoped, tag = 'internal scratch']
  %s0 = inlined_call_operand.vmem [shape: f32[32,128], index: 0, kind: input, shape index: {}]
  %s1 = inlined_call_operand.vmem [shape: f32[4,128], index: 1, kind: input, shape index: {}]
  %s2 = inlined_call_operand.vmem [shape: f32[128,128], index: 2, kind: input, shape index: {}]
  %s3 = inlined_call_operand.vmem [shape: bf16[128,384], index: 3, kind: input, shape index: {}]
  %s4 = inlined_call_operand.vmem [shape: bf16[128,384], index: 4, kind: input, shape index: {}]
  %s5 = inlined_call_operand.vmem [shape: bf16[128,128], index: 5, kind: input, shape index: {}]
  %s6 = inlined_call_operand.vmem [shape: f32[32,128], index: 6, kind: output, shape index: {}]
  %s7 = sld [smem:[#allocation0]]
  $region34: #{basic_residual_block.1} parent=0
    _
  %s9 = ssub.s32 1, %s7
  %s10 = scalar_select 0, %s9, %s7
  // Predicated region
  $region2: #{basic_residual_block.1} parent=0 // pred_check
    _
  $region3: #{basic_residual_block.1} parent=0 // pred_check_branch
    %12 = sbr.rel (0) target = $region5
  $region4: #{basic_residual_block.1} parent=0 // pred_region
    _
  $region5: #{basic_residual_block.1} parent=0 // pred_fallthru
    _
  // Predicated region
  $region6: #{basic_residual_block.1} parent=0 // pred_check
    _
  $region7: #{basic_residual_block.1} parent=0 // pred_check_branch
    %14 = sbr.rel (0) target = $region9
  $region8: #{basic_residual_block.1} parent=0 // pred_region
    _
  $region9: #{basic_residual_block.1} parent=0 // pred_fallthru
    _
  // Predicated region
  $region10: #{basic_residual_block.1} parent=0 // pred_check
    _
  $region11: #{basic_residual_block.1} parent=0 // pred_check_branch
    %16 = sbr.rel (0) target = $region13
  $region12: #{basic_residual_block.1} parent=0 // pred_region
    _
  $region13: #{basic_residual_block.1} parent=0 // pred_fallthru
    _
  // Predicated region
  $region14: #{basic_residual_block.1} parent=0 // pred_check
    _
  $region15: #{basic_residual_block.1} parent=0 // pred_check_branch
    %18 = sbr.rel (0) target = $region17
  $region16: #{basic_residual_block.1} parent=0 // pred_region
    _
  $region17: #{basic_residual_block.1} parent=0 // pred_fallthru
    _
  // Predicated region
  $region18: #{basic_residual_block.1} parent=0 // pred_check
    _
  $region19: #{basic_residual_block.1} parent=0 // pred_check_branch
    %20 = sbr.rel (0) target = $region21
  $region20: #{basic_residual_block.1} parent=0 // pred_region
    _
  $region21: #{basic_residual_block.1} parent=0 // pred_fallthru
    _
  // Predicated region
  $region22: #{basic_residual_block.1} parent=0 // pred_check
    _
  $region23: #{basic_residual_block.1} parent=0 // pred_check_branch
    %22 = sbr.rel (0) target = $region25
  $region24: #{basic_residual_block.1} parent=0 // pred_region
    _
  $region25: #{basic_residual_block.1} parent=0 // pred_fallthru
    _
  %v23 = vld [vmem:[%s0] sm:$0xff]
  %v24 = vld [vmem:[%s0 + $0x8] sm:$0xff]
  %v25 = vld [vmem:[%s0 + $0x10] sm:$0xff]
  %v26 = vld [vmem:[%s0 + $0x18] sm:$0xff]
  %v27 = vlaneseq
  %v28 = vshrl.u32 %v27, 7
  %v29 = vadd.s32 %v28, 8
  %v30 = vadd.s32 %v28, 16
  %v31 = vadd.s32 %v28, 24
  %vm32 = vcmp.lt.s32.totalorder %v28, 0
  %v33 = vsub.s32 0, %v28
  %v34 = vsel %vm32, %v33, %v28
  %v35 = vshrl.u32 %v34, 4
  %v36 = vand.u32 %v34, 15
  %v37 = vsub.s32 0, %v36
  %v38 = vsel %vm32, %v37, %v36
  %vm39 = vcmp.lt.s32.totalorder %v29, 0
  %v40 = vsub.s32 0, %v29
  %v41 = vsel %vm39, %v40, %v29
  %v42 = vshrl.u32 %v41, 4
  %v43 = vand.u32 %v41, 15
  %v44 = vsub.s32 0, %v43
  %v45 = vsel %vm39, %v44, %v43
  %vm46 = vcmp.lt.s32.totalorder %v30, 0
  %v47 = vsub.s32 0, %v30
  %v48 = vsel %vm46, %v47, %v30
  %v49 = vshrl.u32 %v48, 4
  %v50 = vand.u32 %v48, 15
  %v51 = vsub.s32 0, %v50
  %v52 = vsel %vm46, %v51, %v50
  %vm53 = vcmp.lt.s32.totalorder %v31, 0
  %v54 = vsub.s32 0, %v31
  %v55 = vsel %vm53, %v54, %v31
  %v56 = vshrl.u32 %v55, 4
  %v57 = vand.u32 %v55, 15
  %v58 = vsub.s32 0, %v57
  %v59 = vsel %vm53, %v58, %v57
  %vm60 = vcmp.ne.s32.totalorder %v38, 0
  %vm61 = vcmp.ne.s32.totalorder %v45, 0
  %vm62 = vcmp.ne.s32.totalorder %v52, 0
  %vm63 = vcmp.ne.s32.totalorder %v59, 0
  %vm64 = vcmp.lt.s32.totalorder %v38, 0
  %vm65 = vcmp.lt.s32.totalorder %v45, 0
  %vm66 = vcmp.lt.s32.totalorder %v52, 0
  %vm67 = vcmp.lt.s32.totalorder %v59, 0
  %vm68 = vmand %vm64, %vm60
  %vm69 = vmand %vm65, %vm61
  %vm70 = vmand %vm66, %vm62
  %vm71 = vmand %vm67, %vm63
  %v72 = vadd.s32 %v38, 16
  %v73 = vadd.s32 %v45, 16
  %v74 = vadd.s32 %v52, 16
  %v75 = vadd.s32 %v59, 16
  %v76 = vsel %vm68, %v72, %v38
  %v77 = vsel %vm69, %v73, %v45
  %v78 = vsel %vm70, %v74, %v52
  %v79 = vsel %vm71, %v75, %v59
  %vm80 = vcmp.ne.s32.totalorder %v76, 0
  %vm81 = vcmp.ne.s32.totalorder %v77, 0
  %vm82 = vcmp.ne.s32.totalorder %v78, 0
  %vm83 = vcmp.ne.s32.totalorder %v79, 0
  %v84 = vsel %vm80, 1, 0
  %v85 = vsel %vm81, 1, 0
  %v86 = vsel %vm82, 1, 0
  %v87 = vsel %vm83, 1, 0
  %v88 = vcvt.s32.f32 %v84
  %v89 = vcvt.s32.f32 %v85
  %v90 = vcvt.s32.f32 %v86
  %v91 = vcvt.s32.f32 %v87
  %vm92 = vcmp.ne.s32.totalorder %v76, 15
  %vm93 = vcmp.ne.s32.totalorder %v77, 15
  %vm94 = vcmp.ne.s32.totalorder %v78, 15
  %vm95 = vcmp.ne.s32.totalorder %v79, 15
  %v96 = vsel %vm92, 1, 0
  %v97 = vsel %vm93, 1, 0
  %v98 = vsel %vm94, 1, 0
  %v99 = vsel %vm95, 1, 0
  %v100 = vcvt.s32.f32 %v96
  %v101 = vcvt.s32.f32 %v97
  %v102 = vcvt.s32.f32 %v98
  %v103 = vcvt.s32.f32 %v99
  %v104 = vld [vmem:[%s1] sm:$0x1]
  %v105 = vld [vmem:[%s1 + $0x1] sm:$0x1]
  %v106 = vadd.f32 %v23, %v24
  %v107 = vadd.f32 %v106, %v25
  %v108 = vadd.f32 %v107, %v26
  %v109 = vrot.slane %v108, 4
  %v110 = vadd.f32 %v108, %v109
  %v111 = vrot.slane %v110, 2
  %v112 = vadd.f32 %v110, %v111
  %v113 = vrot.slane %v112, 1
  %v114 = vadd.f32 %v112, %v113
  %v115 = vmul.f32 %v23, %v23
  %v116 = vmul.f32 %v24, %v24
  %v117 = vmul.f32 %v25, %v25
  %v118 = vmul.f32 %v26, %v26
  %v119 = vadd.f32 %v115, %v116
  %v120 = vadd.f32 %v119, %v117
  %v121 = vadd.f32 %v120, %v118
  %v122 = vrot.slane %v121, 4
  %v123 = vadd.f32 %v121, %v122
  %v124 = vrot.slane %v123, 2
  %v125 = vadd.f32 %v123, %v124
  %v126 = vrot.slane %v125, 1
  %v127 = vadd.f32 %v125, %v126
  %vm128 = vcmask 1040384
  %v129 = vsel %vm128, %v114, %v127
  %v130 = vld [vmem:[%s2] sm:$0xff]
  %v131 = vld [vmem:[%s2 + $0x8] sm:$0xff]
  %v132 = vld [vmem:[%s2 + $0x10] sm:$0xff]
  %v133 = vld [vmem:[%s2 + $0x18] sm:$0xff]
  %v134 = vld [vmem:[%s2 + $0x20] sm:$0xff]
  %v135 = vld [vmem:[%s2 + $0x28] sm:$0xff]
  %v136 = vld [vmem:[%s2 + $0x30] sm:$0xff]
  %v137 = vld [vmem:[%s2 + $0x38] sm:$0xff]
  %v138 = vld [vmem:[%s2 + $0x40] sm:$0xff]
  %v139 = vld [vmem:[%s2 + $0x48] sm:$0xff]
  %v140 = vld [vmem:[%s2 + $0x50] sm:$0xff]
  %v141 = vld [vmem:[%s2 + $0x58] sm:$0xff]
  %v142 = vld [vmem:[%s2 + $0x60] sm:$0xff]
  %v143 = vld [vmem:[%s2 + $0x68] sm:$0xff]
  %v144 = vld [vmem:[%s2 + $0x70] sm:$0xff]
  %v145 = vld [vmem:[%s2 + $0x78] sm:$0xff]
  %146 = vmatpush.msra.mxu0 %v145
  %147 = vmatpush.msra.mxu0 %v144
  %148 = vmatpush.msra.mxu0 %v143
  %149 = vmatpush.msra.mxu0 %v142
  %150 = vmatpush.msra.mxu0 %v141
  %151 = vmatpush.msra.mxu0 %v140
  %152 = vmatpush.msra.mxu0 %v139
  %153 = vmatpush.msra.mxu0 %v138
  %154 = vmatpush.msra.mxu0 %v137
  %155 = vmatpush.msra.mxu0 %v136
  %156 = vmatpush.msra.mxu0 %v135
  %157 = vmatpush.msra.mxu0 %v134
  %158 = vmatpush.msra.mxu0 %v133
  %159 = vmatpush.msra.mxu0 %v132
  %160 = vmatpush.msra.mxu0 %v131
  %161 = vmatpush.msra.mxu0 %v130
  %162 = vmatmul.f32.gmra.mxu0 %v129
  %v163 = vpop.f32.mrf.mxu0
  %v164 = vadd.f32 0.0, %v163
  %165 = vdwg.mxu0
  %v166 = vmul.f32 %v164, 0.001953125
  %v167 = vmul.f32 %v166, %v166
  %v169 = vrot.slane %v167, 7
  %v171 = vsub.f32 %v166, %v169
  %v172 = vadd.f32 %v171, 1e-05
  %v173 = vrsqrt.pop %v172
  %v174 = vmul.f32 %v173, %v172
  %v175 = vmul.f32 %v174, %v173
  %v176 = vmul.f32 0.5, %v175
  %v177 = vsub.f32 1.5, %v176
  %v178 = vmul.f32 %v173, %v177
  %vm179 = vweird.f32 %v172
  %vm180 = vweird.f32 %v173
  %vm181 = vmor %vm179, %vm180
  %v182 = vsel %vm181, %v173, %v178
  %v184 = vrot.slane %v182, 1
  %v186 = vmul.f32 %v104, %v184
  %v187 = vmul.f32 %v166, %v186
  %v188 = vsub.f32 %v105, %v187
  %v189 = vperm.slane %v186, 0
  %v190 = vmul.f32 %v23, %v189
  %v191 = vmul.f32 %v24, %v189
  %v192 = vmul.f32 %v25, %v189
  %v193 = vmul.f32 %v26, %v189
  %v194 = vperm.slane %v188, 0
  %v195 = vadd.f32 %v190, %v194
  %v196 = vadd.f32 %v191, %v194
  %v197 = vadd.f32 %v192, %v194
  %v198 = vadd.f32 %v193, %v194
  %v199 = vmax.f32 %v195, 0.0
  %v200 = vmax.f32 %v196, 0.0
  %v201 = vmax.f32 %v197, 0.0
  %v202 = vmax.f32 %v198, 0.0
  %v203 = vpack.c.bf16 %v200, %v199
  %v204 = vpack.c.bf16 %v202, %v201
  %v205 = vld [vmem:[%s3] sm:$0xff]
  %v206 = vld [vmem:[%s3 + $0x8] sm:$0xf]
  %v207 = vld [vmem:[%s3 + $0xc] sm:$0xff]
  %v208 = vld [vmem:[%s3 + $0x14] sm:$0xf]
  %v209 = vld [vmem:[%s3 + $0x18] sm:$0xff]
  %v210 = vld [vmem:[%s3 + $0x20] sm:$0xf]
  %v211 = vld [vmem:[%s3 + $0x24] sm:$0xff]
  %v212 = vld [vmem:[%s3 + $0x2c] sm:$0xf]
  %v213 = vld [vmem:[%s3 + $0x30] sm:$0xff]
  %v214 = vld [vmem:[%s3 + $0x38] sm:$0xf]
  %v215 = vld [vmem:[%s3 + $0x3c] sm:$0xff]
  %v216 = vld [vmem:[%s3 + $0x44] sm:$0xf]
  %v217 = vld [vmem:[%s3 + $0x48] sm:$0xff]
  %v218 = vld [vmem:[%s3 + $0x50] sm:$0xf]
  %v219 = vld [vmem:[%s3 + $0x54] sm:$0xff]
  %v220 = vld [vmem:[%s3 + $0x5c] sm:$0xf]
  %v221 = vld [vmem:[%s3 + $0x60] sm:$0xff]
  %v222 = vld [vmem:[%s3 + $0x68] sm:$0xf]
  %v223 = vld [vmem:[%s3 + $0x6c] sm:$0xff]
  %v224 = vld [vmem:[%s3 + $0x74] sm:$0xf]
  %v225 = vld [vmem:[%s3 + $0x78] sm:$0xff]
  %v226 = vld [vmem:[%s3 + $0x80] sm:$0xf]
  %v227 = vld [vmem:[%s3 + $0x84] sm:$0xff]
  %v228 = vld [vmem:[%s3 + $0x8c] sm:$0xf]
  %v229 = vld [vmem:[%s3 + $0x90] sm:$0xff]
  %v230 = vld [vmem:[%s3 + $0x98] sm:$0xf]
  %v231 = vld [vmem:[%s3 + $0x9c] sm:$0xff]
  %v232 = vld [vmem:[%s3 + $0xa4] sm:$0xf]
  %v233 = vld [vmem:[%s3 + $0xa8] sm:$0xff]
  %v234 = vld [vmem:[%s3 + $0xb0] sm:$0xf]
  %v235 = vld [vmem:[%s3 + $0xb4] sm:$0xff]
  %v236 = vld [vmem:[%s3 + $0xbc] sm:$0xf]
  %v269 = vunpack.c.l.b16 %v205
  %v270 = vunpack.c.h.b16 %v205
  %v271 = vunpack.c.l.b16 %v206
  %v272 = vunpack.c.l.b16 %v207
  %v273 = vunpack.c.h.b16 %v207
  %v274 = vunpack.c.l.b16 %v208
  %v275 = vunpack.c.l.b16 %v209
  %v276 = vunpack.c.h.b16 %v209
  %v277 = vunpack.c.l.b16 %v210
  %v278 = vunpack.c.l.b16 %v211
  %v279 = vunpack.c.h.b16 %v211
  %v280 = vunpack.c.l.b16 %v212
  %v281 = vunpack.c.l.b16 %v213
  %v282 = vunpack.c.h.b16 %v213
  %v283 = vunpack.c.l.b16 %v214
  %v284 = vunpack.c.l.b16 %v215
  %v285 = vunpack.c.h.b16 %v215
  %v286 = vunpack.c.l.b16 %v216
  %v287 = vunpack.c.l.b16 %v217
  %v288 = vunpack.c.h.b16 %v217
  %v289 = vunpack.c.l.b16 %v218
  %v290 = vunpack.c.l.b16 %v219
  %v291 = vunpack.c.h.b16 %v219
  %v292 = vunpack.c.l.b16 %v220
  %v293 = vunpack.c.l.b16 %v221
  %v294 = vunpack.c.h.b16 %v221
  %v295 = vunpack.c.l.b16 %v222
  %v296 = vunpack.c.l.b16 %v223
  %v297 = vunpack.c.h.b16 %v223
  %v298 = vunpack.c.l.b16 %v224
  %v299 = vunpack.c.l.b16 %v225
  %v300 = vunpack.c.h.b16 %v225
  %v301 = vunpack.c.l.b16 %v226
  %v302 = vunpack.c.l.b16 %v227
  %v303 = vunpack.c.h.b16 %v227
  %v304 = vunpack.c.l.b16 %v228
  %v305 = vunpack.c.l.b16 %v229
  %v306 = vunpack.c.h.b16 %v229
  %v307 = vunpack.c.l.b16 %v230
  %v308 = vunpack.c.l.b16 %v231
  %v309 = vunpack.c.h.b16 %v231
  %v310 = vunpack.c.l.b16 %v232
  %v311 = vunpack.c.l.b16 %v233
  %v312 = vunpack.c.h.b16 %v233
  %v313 = vunpack.c.l.b16 %v234
  %v314 = vunpack.c.l.b16 %v235
  %v315 = vunpack.c.h.b16 %v235
  %v316 = vunpack.c.l.b16 %v236
  %v317 = vpack.c.b16 %v272, %v269
  %v318 = vpack.c.b16 %v273, %v270
  %v319 = vpack.c.b16 %v274, %v271
  %v320 = vpack.c.b16 %v278, %v275
  %v321 = vpack.c.b16 %v279, %v276
  %v322 = vpack.c.b16 %v280, %v277
  %v323 = vpack.c.b16 %v284, %v281
  %v324 = vpack.c.b16 %v285, %v282
  %v325 = vpack.c.b16 %v286, %v283
  %v326 = vpack.c.b16 %v290, %v287
  %v327 = vpack.c.b16 %v291, %v288
  %v328 = vpack.c.b16 %v292, %v289
  %v329 = vpack.c.b16 %v296, %v293
  %v330 = vpack.c.b16 %v297, %v294
  %v331 = vpack.c.b16 %v298, %v295
  %v332 = vpack.c.b16 %v302, %v299
  %v333 = vpack.c.b16 %v303, %v300
  %v334 = vpack.c.b16 %v304, %v301
  %v335 = vpack.c.b16 %v308, %v305
  %v336 = vpack.c.b16 %v309, %v306
  %v337 = vpack.c.b16 %v310, %v307
  %v338 = vpack.c.b16 %v314, %v311
  %v339 = vpack.c.b16 %v315, %v312
  %v340 = vpack.c.b16 %v316, %v313
  %365 = vmatpush.bf16.msra.mxu0 %v338
  %366 = vmatpush.bf16.msra.mxu0 %v335
  %367 = vmatpush.bf16.msra.mxu0 %v332
  %368 = vmatpush.bf16.msra.mxu0 %v329
  %369 = vmatpush.bf16.msra.mxu0 %v326
  %370 = vmatpush.bf16.msra.mxu0 %v323
  %371 = vmatpush.bf16.msra.mxu0 %v320
  %372 = vmatpush.bf16.msra.mxu0 %v317
  %373 = vmatmul.bf16.gmra.mxu0 %v203
  %v374 = vpop.f32.mrf.mxu0
  %v375 = vadd.f32 0.0, %v374
  %v376 = vpop.f32.mrf.mxu0
  %v377 = vadd.f32 0.0, %v376
  %378 = vmatmul.bf16.gmra.mxu0 %v204
  %v379 = vpop.f32.mrf.mxu0
  %v380 = vadd.f32 0.0, %v379
  %v381 = vpop.f32.mrf.mxu0
  %v382 = vadd.f32 0.0, %v381
  %383 = vdwg.mxu0
  %384 = vmatpush.bf16.msra.mxu0 %v339
  %385 = vmatpush.bf16.msra.mxu0 %v336
  %386 = vmatpush.bf16.msra.mxu0 %v333
  %387 = vmatpush.bf16.msra.mxu0 %v330
  %388 = vmatpush.bf16.msra.mxu0 %v327
  %389 = vmatpush.bf16.msra.mxu0 %v324
  %390 = vmatpush.bf16.msra.mxu0 %v321
  %391 = vmatpush.bf16.msra.mxu0 %v318
  %392 = vmatmul.bf16.gmra.mxu0 %v203
  %v393 = vpop.f32.mrf.mxu0
  %v394 = vadd.f32 0.0, %v393
  %v395 = vpop.f32.mrf.mxu0
  %v396 = vadd.f32 0.0, %v395
  %397 = vmatmul.bf16.gmra.mxu0 %v204
  %v398 = vpop.f32.mrf.mxu0
  %v399 = vadd.f32 0.0, %v398
  %v400 = vpop.f32.mrf.mxu0
  %v401 = vadd.f32 0.0, %v400
  %402 = vdwg.mxu0
  %403 = vmatpush.bf16.msra.mxu0 %v340
  %404 = vmatpush.bf16.msra.mxu0 %v337
  %405 = vmatpush.bf16.msra.mxu0 %v334
  %406 = vmatpush.bf16.msra.mxu0 %v331
  %407 = vmatpush.bf16.msra.mxu0 %v328
  %408 = vmatpush.bf16.msra.mxu0 %v325
  %409 = vmatpush.bf16.msra.mxu0 %v322
  %410 = vmatpush.bf16.msra.mxu0 %v319
  %411 = vmatmul.bf16.gmra.mxu0 %v203
  %v412 = vpop.f32.mrf.mxu0
  %v413 = vadd.f32 0.0, %v412
  %v414 = vpop.f32.mrf.mxu0
  %v415 = vadd.f32 0.0, %v414
  %416 = vmatmul.bf16.gmra.mxu0 %v204
  %v417 = vpop.f32.mrf.mxu0
  %v418 = vadd.f32 0.0, %v417
  %v419 = vpop.f32.mrf.mxu0
  %v420 = vadd.f32 0.0, %v419
  %421 = vdwg.mxu0
  %v422 = vrot.slane %v375, 7
  %v423 = vrot.slane %v377, 7
  %v424 = vrot.slane %v380, 7
  %v425 = vrot.slane %v382, 7
  %vm426 = vcmp.lt.s32.totalorder %v28, 1
  %v427 = vsel %vm426, %v424, %v425
  %v428 = vsel %vm426, %v423, %v424
  %v429 = vsel %vm426, %v422, %v423
  %v430 = vsel %vm426, %v425, %v422
  %v431 = vmul.f32 %v430, %v88
  %v432 = vmul.f32 %v429, %v89
  %v433 = vmul.f32 %v428, %v90
  %v434 = vmul.f32 %v427, %v91
  %v435 = vrot.slane %v413, 1
  %v436 = vrot.slane %v415, 1
  %v437 = vrot.slane %v418, 1
  %v438 = vrot.slane %v420, 1
  %vm439 = vcmp.lt.s32.totalorder %v28, 7
  %v440 = vsel %vm439, %v437, %v438
  %v441 = vsel %vm439, %v436, %v437
  %v442 = vsel %vm439, %v435, %v436
  %v443 = vsel %vm439, %v438, %v435
  %v444 = vmul.f32 %v442, %v100
  %v445 = vmul.f32 %v441, %v101
  %v446 = vmul.f32 %v440, %v102
  %v447 = vmul.f32 %v443, %v103
  %v448 = vadd.f32 %v431, %v394
  %v449 = vadd.f32 %v432, %v396
  %v450 = vadd.f32 %v433, %v399
  %v451 = vadd.f32 %v434, %v401
  %v452 = vadd.f32 %v448, %v444
  %v453 = vadd.f32 %v449, %v445
  %v454 = vadd.f32 %v450, %v446
  %v455 = vadd.f32 %v451, %v447
  %v456 = vld [vmem:[%s1 + $0x2] sm:$0x1]
  %v457 = vld [vmem:[%s1 + $0x3] sm:$0x1]
  %v458 = vadd.f32 %v452, %v453
  %v459 = vadd.f32 %v458, %v454
  %v460 = vadd.f32 %v459, %v455
  %v461 = vrot.slane %v460, 4
  %v462 = vadd.f32 %v460, %v461
  %v463 = vrot.slane %v462, 2
  %v464 = vadd.f32 %v462, %v463
  %v465 = vrot.slane %v464, 1
  %v466 = vadd.f32 %v464, %v465
  %v467 = vmul.f32 %v452, %v452
  %v468 = vmul.f32 %v453, %v453
  %v469 = vmul.f32 %v454, %v454
  %v470 = vmul.f32 %v455, %v455
  %v471 = vadd.f32 %v467, %v468
  %v472 = vadd.f32 %v471, %v469
  %v473 = vadd.f32 %v472, %v470
  %v474 = vrot.slane %v473, 4
  %v475 = vadd.f32 %v473, %v474
  %v476 = vrot.slane %v475, 2
  %v477 = vadd.f32 %v475, %v476
  %v478 = vrot.slane %v477, 1
  %v479 = vadd.f32 %v477, %v478
  %v480 = vsel %vm128, %v466, %v479
  %481 = vmatpush.msra.mxu0 %v145
  %482 = vmatpush.msra.mxu0 %v144
  %483 = vmatpush.msra.mxu0 %v143
  %484 = vmatpush.msra.mxu0 %v142
  %485 = vmatpush.msra.mxu0 %v141
  %486 = vmatpush.msra.mxu0 %v140
  %487 = vmatpush.msra.mxu0 %v139
  %488 = vmatpush.msra.mxu0 %v138
  %489 = vmatpush.msra.mxu0 %v137
  %490 = vmatpush.msra.mxu0 %v136
  %491 = vmatpush.msra.mxu0 %v135
  %492 = vmatpush.msra.mxu0 %v134
  %493 = vmatpush.msra.mxu0 %v133
  %494 = vmatpush.msra.mxu0 %v132
  %495 = vmatpush.msra.mxu0 %v131
  %496 = vmatpush.msra.mxu0 %v130
  %497 = vmatmul.f32.gmra.mxu0 %v480
  %v498 = vpop.f32.mrf.mxu0
  %v499 = vadd.f32 0.0, %v498
  %500 = vdwg.mxu0
  %v501 = vmul.f32 %v499, 0.001953125
  %v502 = vmul.f32 %v501, %v501
  %v504 = vrot.slane %v502, 7
  %v506 = vsub.f32 %v501, %v504
  %v507 = vadd.f32 %v506, 1e-05
  %v508 = vrsqrt.pop %v507
  %v509 = vmul.f32 %v508, %v507
  %v510 = vmul.f32 %v509, %v508
  %v511 = vmul.f32 0.5, %v510
  %v512 = vsub.f32 1.5, %v511
  %v513 = vmul.f32 %v508, %v512
  %vm514 = vweird.f32 %v507
  %vm515 = vweird.f32 %v508
  %vm516 = vmor %vm514, %vm515
  %v517 = vsel %vm516, %v508, %v513
  %v519 = vrot.slane %v517, 1
  %v521 = vmul.f32 %v456, %v519
  %v522 = vmul.f32 %v501, %v521
  %v523 = vsub.f32 %v457, %v522
  %v524 = vperm.slane %v521, 0
  %v525 = vmul.f32 %v452, %v524
  %v526 = vmul.f32 %v453, %v524
  %v527 = vmul.f32 %v454, %v524
  %v528 = vmul.f32 %v455, %v524
  %v529 = vperm.slane %v523, 0
  %v530 = vadd.f32 %v525, %v529
  %v531 = vadd.f32 %v526, %v529
  %v532 = vadd.f32 %v527, %v529
  %v533 = vadd.f32 %v528, %v529
  %v534 = vmax.f32 %v530, 0.0
  %v535 = vmax.f32 %v531, 0.0
  %v536 = vmax.f32 %v532, 0.0
  %v537 = vmax.f32 %v533, 0.0
  %v538 = vpack.c.bf16 %v535, %v534
  %v539 = vpack.c.bf16 %v537, %v536
  %v540 = vld [vmem:[%s4] sm:$0xff]
  %v541 = vld [vmem:[%s4 + $0x8] sm:$0xf]
  %v542 = vld [vmem:[%s4 + $0xc] sm:$0xff]
  %v543 = vld [vmem:[%s4 + $0x14] sm:$0xf]
  %v544 = vld [vmem:[%s4 + $0x18] sm:$0xff]
  %v545 = vld [vmem:[%s4 + $0x20] sm:$0xf]
  %v546 = vld [vmem:[%s4 + $0x24] sm:$0xff]
  %v547 = vld [vmem:[%s4 + $0x2c] sm:$0xf]
  %v548 = vld [vmem:[%s4 + $0x30] sm:$0xff]
  %v549 = vld [vmem:[%s4 + $0x38] sm:$0xf]
  %v550 = vld [vmem:[%s4 + $0x3c] sm:$0xff]
  %v551 = vld [vmem:[%s4 + $0x44] sm:$0xf]
  %v552 = vld [vmem:[%s4 + $0x48] sm:$0xff]
  %v553 = vld [vmem:[%s4 + $0x50] sm:$0xf]
  %v554 = vld [vmem:[%s4 + $0x54] sm:$0xff]
  %v555 = vld [vmem:[%s4 + $0x5c] sm:$0xf]
  %v556 = vld [vmem:[%s4 + $0x60] sm:$0xff]
  %v557 = vld [vmem:[%s4 + $0x68] sm:$0xf]
  %v558 = vld [vmem:[%s4 + $0x6c] sm:$0xff]
  %v559 = vld [vmem:[%s4 + $0x74] sm:$0xf]
  %v560 = vld [vmem:[%s4 + $0x78] sm:$0xff]
  %v561 = vld [vmem:[%s4 + $0x80] sm:$0xf]
  %v562 = vld [vmem:[%s4 + $0x84] sm:$0xff]
  %v563 = vld [vmem:[%s4 + $0x8c] sm:$0xf]
  %v564 = vld [vmem:[%s4 + $0x90] sm:$0xff]
  %v565 = vld [vmem:[%s4 + $0x98] sm:$0xf]
  %v566 = vld [vmem:[%s4 + $0x9c] sm:$0xff]
  %v567 = vld [vmem:[%s4 + $0xa4] sm:$0xf]
  %v568 = vld [vmem:[%s4 + $0xa8] sm:$0xff]
  %v569 = vld [vmem:[%s4 + $0xb0] sm:$0xf]
  %v570 = vld [vmem:[%s4 + $0xb4] sm:$0xff]
  %v571 = vld [vmem:[%s4 + $0xbc] sm:$0xf]
  %v604 = vunpack.c.l.b16 %v540
  %v605 = vunpack.c.h.b16 %v540
  %v606 = vunpack.c.l.b16 %v541
  %v607 = vunpack.c.l.b16 %v542
  %v608 = vunpack.c.h.b16 %v542
  %v609 = vunpack.c.l.b16 %v543
  %v610 = vunpack.c.l.b16 %v544
  %v611 = vunpack.c.h.b16 %v544
  %v612 = vunpack.c.l.b16 %v545
  %v613 = vunpack.c.l.b16 %v546
  %v614 = vunpack.c.h.b16 %v546
  %v615 = vunpack.c.l.b16 %v547
  %v616 = vunpack.c.l.b16 %v548
  %v617 = vunpack.c.h.b16 %v548
  %v618 = vunpack.c.l.b16 %v549
  %v619 = vunpack.c.l.b16 %v550
  %v620 = vunpack.c.h.b16 %v550
  %v621 = vunpack.c.l.b16 %v551
  %v622 = vunpack.c.l.b16 %v552
  %v623 = vunpack.c.h.b16 %v552
  %v624 = vunpack.c.l.b16 %v553
  %v625 = vunpack.c.l.b16 %v554
  %v626 = vunpack.c.h.b16 %v554
  %v627 = vunpack.c.l.b16 %v555
  %v628 = vunpack.c.l.b16 %v556
  %v629 = vunpack.c.h.b16 %v556
  %v630 = vunpack.c.l.b16 %v557
  %v631 = vunpack.c.l.b16 %v558
  %v632 = vunpack.c.h.b16 %v558
  %v633 = vunpack.c.l.b16 %v559
  %v634 = vunpack.c.l.b16 %v560
  %v635 = vunpack.c.h.b16 %v560
  %v636 = vunpack.c.l.b16 %v561
  %v637 = vunpack.c.l.b16 %v562
  %v638 = vunpack.c.h.b16 %v562
  %v639 = vunpack.c.l.b16 %v563
  %v640 = vunpack.c.l.b16 %v564
  %v641 = vunpack.c.h.b16 %v564
  %v642 = vunpack.c.l.b16 %v565
  %v643 = vunpack.c.l.b16 %v566
  %v644 = vunpack.c.h.b16 %v566
  %v645 = vunpack.c.l.b16 %v567
  %v646 = vunpack.c.l.b16 %v568
  %v647 = vunpack.c.h.b16 %v568
  %v648 = vunpack.c.l.b16 %v569
  %v649 = vunpack.c.l.b16 %v570
  %v650 = vunpack.c.h.b16 %v570
  %v651 = vunpack.c.l.b16 %v571
  %v652 = vpack.c.b16 %v607, %v604
  %v653 = vpack.c.b16 %v608, %v605
  %v654 = vpack.c.b16 %v609, %v606
  %v655 = vpack.c.b16 %v613, %v610
  %v656 = vpack.c.b16 %v614, %v611
  %v657 = vpack.c.b16 %v615, %v612
  %v658 = vpack.c.b16 %v619, %v616
  %v659 = vpack.c.b16 %v620, %v617
  %v660 = vpack.c.b16 %v621, %v618
  %v661 = vpack.c.b16 %v625, %v622
  %v662 = vpack.c.b16 %v626, %v623
  %v663 = vpack.c.b16 %v627, %v624
  %v664 = vpack.c.b16 %v631, %v628
  %v665 = vpack.c.b16 %v632, %v629
  %v666 = vpack.c.b16 %v633, %v630
  %v667 = vpack.c.b16 %v637, %v634
  %v668 = vpack.c.b16 %v638, %v635
  %v669 = vpack.c.b16 %v639, %v636
  %v670 = vpack.c.b16 %v643, %v640
  %v671 = vpack.c.b16 %v644, %v641
  %v672 = vpack.c.b16 %v645, %v642
  %v673 = vpack.c.b16 %v649, %v646
  %v674 = vpack.c.b16 %v650, %v647
  %v675 = vpack.c.b16 %v651, %v648
  %700 = vmatpush.bf16.msra.mxu0 %v673
  %701 = vmatpush.bf16.msra.mxu0 %v670
  %702 = vmatpush.bf16.msra.mxu0 %v667
  %703 = vmatpush.bf16.msra.mxu0 %v664
  %704 = vmatpush.bf16.msra.mxu0 %v661
  %705 = vmatpush.bf16.msra.mxu0 %v658
  %706 = vmatpush.bf16.msra.mxu0 %v655
  %707 = vmatpush.bf16.msra.mxu0 %v652
  %708 = vmatmul.bf16.gmra.mxu0 %v538
  %v709 = vpop.f32.mrf.mxu0
  %v710 = vadd.f32 0.0, %v709
  %v711 = vpop.f32.mrf.mxu0
  %v712 = vadd.f32 0.0, %v711
  %713 = vmatmul.bf16.gmra.mxu0 %v539
  %v714 = vpop.f32.mrf.mxu0
  %v715 = vadd.f32 0.0, %v714
  %v716 = vpop.f32.mrf.mxu0
  %v717 = vadd.f32 0.0, %v716
  %718 = vdwg.mxu0
  %719 = vmatpush.bf16.msra.mxu0 %v674
  %720 = vmatpush.bf16.msra.mxu0 %v671
  %721 = vmatpush.bf16.msra.mxu0 %v668
  %722 = vmatpush.bf16.msra.mxu0 %v665
  %723 = vmatpush.bf16.msra.mxu0 %v662
  %724 = vmatpush.bf16.msra.mxu0 %v659
  %725 = vmatpush.bf16.msra.mxu0 %v656
  %726 = vmatpush.bf16.msra.mxu0 %v653
  %727 = vmatmul.bf16.gmra.mxu0 %v538
  %v728 = vpop.f32.mrf.mxu0
  %v729 = vadd.f32 0.0, %v728
  %v730 = vpop.f32.mrf.mxu0
  %v731 = vadd.f32 0.0, %v730
  %732 = vmatmul.bf16.gmra.mxu0 %v539
  %v733 = vpop.f32.mrf.mxu0
  %v734 = vadd.f32 0.0, %v733
  %v735 = vpop.f32.mrf.mxu0
  %v736 = vadd.f32 0.0, %v735
  %737 = vdwg.mxu0
  %738 = vmatpush.bf16.msra.mxu0 %v675
  %739 = vmatpush.bf16.msra.mxu0 %v672
  %740 = vmatpush.bf16.msra.mxu0 %v669
  %741 = vmatpush.bf16.msra.mxu0 %v666
  %742 = vmatpush.bf16.msra.mxu0 %v663
  %743 = vmatpush.bf16.msra.mxu0 %v660
  %744 = vmatpush.bf16.msra.mxu0 %v657
  %745 = vmatpush.bf16.msra.mxu0 %v654
  %746 = vmatmul.bf16.gmra.mxu0 %v538
  %v747 = vpop.f32.mrf.mxu0
  %v748 = vadd.f32 0.0, %v747
  %v749 = vpop.f32.mrf.mxu0
  %v750 = vadd.f32 0.0, %v749
  %751 = vmatmul.bf16.gmra.mxu0 %v539
  %v752 = vpop.f32.mrf.mxu0
  %v753 = vadd.f32 0.0, %v752
  %v754 = vpop.f32.mrf.mxu0
  %v755 = vadd.f32 0.0, %v754
  %756 = vdwg.mxu0
  %v757 = vpack.c.bf16 %v24, %v23
  %v758 = vpack.c.bf16 %v26, %v25
  %v759 = vld [vmem:[%s5] sm:$0xf]
  %v760 = vld [vmem:[%s5 + $0x4] sm:$0xf]
  %v761 = vld [vmem:[%s5 + $0x8] sm:$0xf]
  %v762 = vld [vmem:[%s5 + $0xc] sm:$0xf]
  %v763 = vld [vmem:[%s5 + $0x10] sm:$0xf]
  %v764 = vld [vmem:[%s5 + $0x14] sm:$0xf]
  %v765 = vld [vmem:[%s5 + $0x18] sm:$0xf]
  %v766 = vld [vmem:[%s5 + $0x1c] sm:$0xf]
  %v767 = vld [vmem:[%s5 + $0x20] sm:$0xf]
  %v768 = vld [vmem:[%s5 + $0x24] sm:$0xf]
  %v769 = vld [vmem:[%s5 + $0x28] sm:$0xf]
  %v770 = vld [vmem:[%s5 + $0x2c] sm:$0xf]
  %v771 = vld [vmem:[%s5 + $0x30] sm:$0xf]
  %v772 = vld [vmem:[%s5 + $0x34] sm:$0xf]
  %v773 = vld [vmem:[%s5 + $0x38] sm:$0xf]
  %v774 = vld [vmem:[%s5 + $0x3c] sm:$0xf]
  %v791 = vunpack.c.l.b16 %v759
  %v792 = vunpack.c.l.b16 %v760
  %v793 = vunpack.c.l.b16 %v761
  %v794 = vunpack.c.l.b16 %v762
  %v795 = vunpack.c.l.b16 %v763
  %v796 = vunpack.c.l.b16 %v764
  %v797 = vunpack.c.l.b16 %v765
  %v798 = vunpack.c.l.b16 %v766
  %v799 = vunpack.c.l.b16 %v767
  %v800 = vunpack.c.l.b16 %v768
  %v801 = vunpack.c.l.b16 %v769
  %v802 = vunpack.c.l.b16 %v770
  %v803 = vunpack.c.l.b16 %v771
  %v804 = vunpack.c.l.b16 %v772
  %v805 = vunpack.c.l.b16 %v773
  %v806 = vunpack.c.l.b16 %v774
  %v807 = vpack.c.b16 %v792, %v791
  %v808 = vpack.c.b16 %v794, %v793
  %v809 = vpack.c.b16 %v796, %v795
  %v810 = vpack.c.b16 %v798, %v797
  %v811 = vpack.c.b16 %v800, %v799
  %v812 = vpack.c.b16 %v802, %v801
  %v813 = vpack.c.b16 %v804, %v803
  %v814 = vpack.c.b16 %v806, %v805
  %823 = vmatpush.bf16.msra.mxu0 %v814
  %824 = vmatpush.bf16.msra.mxu0 %v813
  %825 = vmatpush.bf16.msra.mxu0 %v812
  %826 = vmatpush.bf16.msra.mxu0 %v811
  %827 = vmatpush.bf16.msra.mxu0 %v810
  %828 = vmatpush.bf16.msra.mxu0 %v809
  %829 = vmatpush.bf16.msra.mxu0 %v808
  %830 = vmatpush.bf16.msra.mxu0 %v807
  %831 = vmatmul.bf16.gmra.mxu0 %v757
  %v832 = vpop.f32.mrf.mxu0
  %v833 = vadd.f32 0.0, %v832
  %v834 = vpop.f32.mrf.mxu0
  %v835 = vadd.f32 0.0, %v834
  %836 = vmatmul.bf16.gmra.mxu0 %v758
  %v837 = vpop.f32.mrf.mxu0
  %v838 = vadd.f32 0.0, %v837
  %v839 = vpop.f32.mrf.mxu0
  %v840 = vadd.f32 0.0, %v839
  %841 = vdwg.mxu0
  %v842 = vrot.slane %v710, 7
  %v843 = vrot.slane %v712, 7
  %v844 = vrot.slane %v715, 7
  %v845 = vrot.slane %v717, 7
  %v846 = vsel %vm426, %v844, %v845
  %v847 = vsel %vm426, %v843, %v844
  %v848 = vsel %vm426, %v842, %v843
  %v849 = vsel %vm426, %v845, %v842
  %v850 = vmul.f32 %v849, %v88
  %v851 = vmul.f32 %v848, %v89
  %v852 = vmul.f32 %v847, %v90
  %v853 = vmul.f32 %v846, %v91
  %v854 = vrot.slane %v748, 1
  %v855 = vrot.slane %v750, 1
  %v856 = vrot.slane %v753, 1
  %v857 = vrot.slane %v755, 1
  %v858 = vsel %vm439, %v856, %v857
  %v859 = vsel %vm439, %v855, %v856
  %v860 = vsel %vm439, %v854, %v855
  %v861 = vsel %vm439, %v857, %v854
  %v862 = vmul.f32 %v860, %v100
  %v863 = vmul.f32 %v859, %v101
  %v864 = vmul.f32 %v858, %v102
  %v865 = vmul.f32 %v861, %v103
  %v866 = vadd.f32 %v850, %v729
  %v867 = vadd.f32 %v851, %v731
  %v868 = vadd.f32 %v852, %v734
  %v869 = vadd.f32 %v853, %v736
  %v870 = vadd.f32 %v866, %v862
  %v871 = vadd.f32 %v867, %v863
  %v872 = vadd.f32 %v868, %v864
  %v873 = vadd.f32 %v869, %v865
  %v874 = vadd.f32 %v870, %v833
  %v875 = vadd.f32 %v871, %v835
  %v876 = vadd.f32 %v872, %v838
  %v877 = vadd.f32 %v873, %v840
  %878 = vst [vmem:[%s6] sm:$0xff] %v874
  %879 = vst [vmem:[%s6 + $0x8] sm:$0xff] %v875
  %880 = vst [vmem:[%s6 + $0x10] sm:$0xff] %v876
  %881 = vst [vmem:[%s6 + $0x18] sm:$0xff] %v877
  // Predicated region
  $region26: #{basic_residual_block.1} parent=0 // pred_check
    _
  $region27: #{basic_residual_block.1} parent=0 // pred_check_branch
    %883 = sbr.rel (0) target = $region29
  $region28: #{basic_residual_block.1} parent=0 // pred_region
    _
  $region29: #{basic_residual_block.1} parent=0 // pred_fallthru
    _
  // Predicated region
  $region30: #{basic_residual_block.1} parent=0 // pred_check
    _
  $region31: #{basic_residual_block.1} parent=0 // pred_check_branch
    %885 = sbr.rel (0) target = $region33
  $region32: #{basic_residual_block.1} parent=0 // pred_region
    _
  $region33: #{basic_residual_block.1} parent=0 // pred_fallthru
    _

</llo_original>
